<compile_context>
chip_gen: v5e
topology: v5e:2x2
jax: 0.10.0
libtpu: 0.0.40
codegen_flags: <defaults>
</compile_context>

<pallas_src>
import functools

import jax
import jax.numpy as jnp
from jax import lax
from jax.experimental import pallas as pl
from jax.experimental.pallas import tpu as pltpu

# Contract the last dim of lhs with the last dim of rhs (no transposes).
_DN = (((1,), (1,)), ((), ()))


def _moe_kernel(ids_ref, na_ref, x_ref, w13_ref, w2_ref, rw_ref, o_ref, acc_ref):
    """grid = (token_tiles, E, I_tiles); acc_ref accumulates weighted expert outputs."""
    del ids_ref  # expert schedule is consumed by the index_maps only
    e = pl.program_id(1)
    i = pl.program_id(2)

    @pl.when((e == 0) & (i == 0))
    def _init():
        acc_ref[...] = jnp.zeros_like(acc_ref)

    # Grid slots past the number of active experts do no compute; their
    # index_maps also repeat the previous block index, so no weight DMA either.
    @pl.when(e < na_ref[0])
    def _compute():
        x = x_ref[...]                                               # [TT, H]
        gate = lax.dot_general(x, w13_ref[0], _DN,
                               preferred_element_type=jnp.float32)   # [TT, TI]
        up = lax.dot_general(x, w13_ref[1], _DN,
                             preferred_element_type=jnp.float32)     # [TT, TI]
        act = (gate * jax.nn.sigmoid(gate) * up).astype(x.dtype)     # SiLU(gate)*up
        down = lax.dot_general(act, w2_ref[...], _DN,
                               preferred_element_type=jnp.float32)   # [TT, H]
        acc_ref[...] += rw_ref[...] * down                           # rw: [TT, 1]

    @pl.when((e == pl.num_programs(1) - 1) & (i == pl.num_programs(2) - 1))
    def _finalize():
        o_ref[...] = acc_ref[...].astype(o_ref.dtype)


def _pick_tile(dim, preferred, align):
    """Largest multiple of `align` dividing `dim` and <= preferred, else full dim."""
    if dim % align != 0:
        return dim
    t = min(preferred, dim)
    t -= t % align
    while t >= align:
        if dim % t == 0:
            return t
        t -= align
    return dim


@functools.partial(jax.jit,
                   static_argnames=("top_k", "renormalize", "token_tile",
                                    "inter_tile"))
def fused_moe_pallas(x, w13_weight, w2_weight, router_logits, top_k,
                     renormalize=True, token_tile=None, inter_tile=None):
    T, H = x.shape
    E, two_i, _ = w13_weight.shape
    inter = two_i // 2
    assert w2_weight.shape == (E, H, inter)

    # Tile sizes: intermediate tiles 128-aligned (MXU), token tiles 8-aligned.
    TT = _pick_tile(T, token_tile if token_tile is not None else 256, 8)
    TI = _pick_tile(inter, inter_tile if inter_tile is not None else 512, 128)
    n_t = T // TT
    n_i = inter // TI

    # --- routing (glue, plain JAX): softmax -> top-k -> optional renormalize ---
    probs = jax.nn.softmax(router_logits.astype(jnp.float32), axis=-1)
    topk_w, topk_i = jax.lax.top_k(probs, top_k)
    if renormalize:
        topk_w = topk_w / jnp.sum(topk_w, axis=-1, keepdims=True)
    onehot = jax.nn.one_hot(topk_i, E, dtype=jnp.float32)            # [T, K, E]
    dense_w = jnp.sum(onehot * topk_w[..., None], axis=1)            # [T, E]
    rw = dense_w.T[..., None]                                        # [E, T, 1]

    # --- active-expert schedule (scalar prefetch) ---
    active = jnp.any(dense_w > 0.0, axis=0)                          # [E]
    num_active = jnp.maximum(jnp.sum(active.astype(jnp.int32)), 1)
    order = jnp.argsort(jnp.where(active, 0, 1).astype(jnp.int32))   # actives first
    pos = jnp.minimum(jnp.arange(E), num_active - 1)                 # clamp tail
    expert_ids = order[pos].astype(jnp.int32)                        # [E]
    num_active_arr = num_active.reshape((1,)).astype(jnp.int32)      # [1]

    # View gate/up halves on a separate axis (free metadata reshape).
    w13r = w13_weight.reshape(E, 2, inter, H)

    # VMEM budget for the chosen tiles (double-buffered pipelined operands).
    itm_x = jnp.dtype(x.dtype).itemsize
    itm_w = jnp.dtype(w13_weight.dtype).itemsize
    est = (2 * (2 * TI * H * itm_w      # w13 tile
                + H * TI * itm_w        # w2 tile
                + TT * H * itm_x        # x tile
                + TT * H * itm_x        # output tile
                + TT * 128 * 4)         # routing-weight tile (lane padded)
           + TT * H * 4)                # f32 accumulator scratch
    vmem_limit = int(min(max(2 * est, 8 * 2**20), 100 * 2**20))

    out = pl.pallas_call(
        _moe_kernel,
        out_shape=jax.ShapeDtypeStruct((T, H), x.dtype),
        grid_spec=pltpu.PrefetchScalarGridSpec(
            num_scalar_prefetch=2,
            grid=(n_t, E, n_i),
            in_specs=[
                # x: resident per token-tile (block index only depends on t)
                pl.BlockSpec((TT, H), lambda t, e, i, ids, na: (t, 0)),
                # w13 tile: [2, TI, H] of the scheduled expert
                pl.BlockSpec((None, 2, TI, H),
                             lambda t, e, i, ids, na: (ids[e], 0, i, 0)),
                # w2 tile: [H, TI] of the scheduled expert
                pl.BlockSpec((None, H, TI),
                             lambda t, e, i, ids, na: (ids[e], 0, i)),
                # routing weights for (expert, token tile): [TT, 1]
                pl.BlockSpec((None, TT, 1),
                             lambda t, e, i, ids, na: (ids[e], t, 0)),
            ],
            out_specs=pl.BlockSpec((TT, H), lambda t, e, i, ids, na: (t, 0)),
            scratch_shapes=[pltpu.VMEM((TT, H), jnp.float32)],
        ),
        compiler_params=pltpu.CompilerParams(
            dimension_semantics=("parallel", "arbitrary", "arbitrary"),
            vmem_limit_bytes=vmem_limit,
        ),
    )(expert_ids, num_active_arr, x, w13r, w2_weight, rw)
    # TODO(synk): tensor-parallel all-reduce (reduce_results / world_size > 1)
    # is a cross-device collective and not part of this single-core kernel.
    # TODO(synk): grouped top-k routing (use_grouped_topk) not implemented.
    return out


def _reference_moe(x, w13, w2, router_logits, top_k, renormalize=True):
    """Plain-JAX reference matching fused_moe semantics (for verification)."""
    T, H = x.shape
    E, two_i, _ = w13.shape
    inter = two_i // 2
    probs = jax.nn.softmax(router_logits.astype(jnp.float32), axis=-1)
    topk_w, topk_i = jax.lax.top_k(probs, top_k)
    if renormalize:
        topk_w = topk_w / jnp.sum(topk_w, axis=-1, keepdims=True)
    xf = x.astype(jnp.float32)
    out = jnp.zeros((T, H), jnp.float32)
    for e in range(E):
        gate = xf @ w13[e, :inter, :].astype(jnp.float32).T
        up = xf @ w13[e, inter:, :].astype(jnp.float32).T
        act = gate * jax.nn.sigmoid(gate) * up
        down = act @ w2[e].astype(jnp.float32).T
        w_e = jnp.sum(jnp.where(topk_i == e, topk_w, 0.0), axis=-1, keepdims=True)
        out = out + w_e * down
    return out.astype(x.dtype)


if __name__ == "__main__":
    E, top_k = 8, 2

    # ---- test 1: f32; exercises token tiling, intermediate tiling and the
    #              inactive-expert skip path (experts 5..7 never selected). ----
    T, H, inter = 16, 128, 256
    key = jax.random.PRNGKey(0)
    k_x, k_logits, k_w13, k_w2 = jax.random.split(key, 4)
    x = jax.random.normal(k_x, (T, H), dtype=jnp.float32)
    router_logits = jax.random.normal(k_logits, (T, E), dtype=jnp.float32)
    router_logits = router_logits - 100.0 * (jnp.arange(E) >= 5).astype(jnp.float32)
    w13_weight = 0.05 * jax.random.normal(
        k_w13, (E, 2 * inter, H), dtype=jnp.float32)
    w2_weight = 0.05 * jax.random.normal(
        k_w2, (E, H, inter), dtype=jnp.float32)

    out = fused_moe_pallas(x, w13_weight, w2_weight, router_logits, top_k,
                           renormalize=True, token_tile=8, inter_tile=128)
    out = jax.block_until_ready(out)
    ref = _reference_moe(x, w13_weight, w2_weight, router_logits, top_k,
                         renormalize=True)
    assert out.shape == (T, H)
    assert jnp.allclose(out, ref, atol=5e-3, rtol=5e-3), "f32 mismatch vs reference"

    # ---- test 2: bf16 weights/activations at 128-aligned shapes ----
    T2, H2, I2 = 64, 256, 256
    k_x2, k_l2, k_w13b, k_w2b = jax.random.split(jax.random.PRNGKey(0), 4)
    xb = jax.random.normal(k_x2, (T2, H2), dtype=jnp.float32).astype(jnp.bfloat16)
    logits2 = jax.random.normal(k_l2, (T2, E), dtype=jnp.float32)
    w13b = (0.05 * jax.random.normal(
        k_w13b, (E, 2 * I2, H2), dtype=jnp.float32)).astype(jnp.bfloat16)
    w2b = (0.05 * jax.random.normal(
        k_w2b, (E, H2, I2), dtype=jnp.float32)).astype(jnp.bfloat16)

    outb = fused_moe_pallas(xb, w13b, w2b, logits2, top_k,
                            renormalize=True, token_tile=32, inter_tile=128)
    outb = jax.block_until_ready(outb)
    refb = _reference_moe(xb, w13b, w2b, logits2, top_k, renormalize=True)
    assert jnp.allclose(outb.astype(jnp.float32), refb.astype(jnp.float32),
                        atol=5e-2, rtol=5e-2), "bf16 mismatch vs reference"

    print("KERNEL_OK")
</pallas_src>

<mosaic_0001>
module attributes {stable_mosaic.version = 11 : i64} {
  func.func @_moe_kernel(%arg0: i32, %arg1: i32, %arg2: i32, %arg3: memref<8xi32, #tpu.memory_space<smem>>, %arg4: memref<1xi32, #tpu.memory_space<smem>>, %arg5: memref<8x128xf32, #tpu.memory_space<vmem>>, %arg6: memref<1x2x128x128xf32, #tpu.memory_space<vmem>>, %arg7: memref<1x128x128xf32, #tpu.memory_space<vmem>>, %arg8: memref<1x8x1xf32, #tpu.memory_space<vmem>>, %arg9: memref<8x128xf32, #tpu.memory_space<vmem>>, %arg10: memref<8x128xf32, #tpu.memory_space<vmem>>) attributes {dimension_semantics = [#tpu.dimension_semantics<parallel>, #tpu.dimension_semantics<arbitrary>, #tpu.dimension_semantics<arbitrary>], iteration_bounds = array<i64: 2, 8, 2>, scalar_prefetch = 2 : i64, scratch_operands = 1 : i64, tpu.core_type = #tpu.core_type<tc>, window_params = [{transform_indices = @transform_0, window_bounds = array<i64: 8, 128>}, {transform_indices = @transform_1, window_bounds = array<i64: 1, 2, 128, 128>}, {transform_indices = @transform_2, window_bounds = array<i64: 1, 128, 128>}, {transform_indices = @transform_3, window_bounds = array<i64: 1, 8, 1>}, {transform_indices = @transform_4, window_bounds = array<i64: 8, 128>}]} {
    %c0_i32 = arith.constant 0 : i32
    %0 = arith.cmpi eq, %arg1, %c0_i32 : i32
    %c0_i32_0 = arith.constant 0 : i32
    %1 = arith.cmpi eq, %arg2, %c0_i32_0 : i32
    %2 = arith.andi %0, %1 : i1
    %3 = arith.extui %2 : i1 to i32
    %c0_i32_1 = arith.constant 0 : i32
    %4 = arith.cmpi ne, %3, %c0_i32_1 : i32
    scf.if %4 {
      %cst = arith.constant 0.000000e+00 : f32
      %14 = vector.broadcast %cst : f32 to vector<8x128xf32>
      %c0_4 = arith.constant 0 : index
      %c0_5 = arith.constant 0 : index
      %15 = vector.load %arg10[%c0_4, %c0_5] : memref<8x128xf32, #tpu.memory_space<vmem>>, vector<8x128xf32>
      tpu.vector_store %arg10[%c0_4, %c0_5], %14 {strides = array<i32>} : memref<8x128xf32, #tpu.memory_space<vmem>>, vector<8x128xf32>,
    } else {
    }
    %c0 = arith.constant 0 : index
    %5 = memref.load %arg4[%c0] : memref<1xi32, #tpu.memory_space<smem>>
    %6 = arith.cmpi slt, %arg1, %5 : i32
    %7 = arith.extui %6 : i1 to i32
    %c0_i32_2 = arith.constant 0 : i32
    %8 = arith.cmpi ne, %7, %c0_i32_2 : i32
    scf.if %8 {
      %c0_4 = arith.constant 0 : index
      %c0_5 = arith.constant 0 : index
      %14 = vector.load %arg5[%c0_4, %c0_5] : memref<8x128xf32, #tpu.memory_space<vmem>>, vector<8x128xf32>
      %c0_6 = arith.constant 0 : index
      %c0_7 = arith.constant 0 : index
      %c0_8 = arith.constant 0 : index
      %c0_9 = arith.constant 0 : index
      %15 = vector.load %arg6[%c0_6, %c0_7, %c0_8, %c0_9] : memref<1x2x128x128xf32, #tpu.memory_space<vmem>>, vector<1x1x128x128xf32>
      %16 = vector.shape_cast %15 : vector<1x1x128x128xf32> to vector<128x128xf32>
      %cst = arith.constant dense<0.000000e+00> : vector<8x128xf32>
      %17 = tpu.matmul %14, %16, %cst {dimension_numbers = #tpu.dot_dimension_numbers<[1], [1], [0], [0], [0, 0, 1, 0], [], []>} : vector<8x128xf32>, vector<128x128xf32>, vector<8x128xf32> -> vector<8x128xf32>
      %c0_10 = arith.constant 0 : index
      %c1 = arith.constant 1 : index
      %c0_11 = arith.constant 0 : index
      %c0_12 = arith.constant 0 : index
      %18 = vector.load %arg6[%c0_10, %c1, %c0_11, %c0_12] : memref<1x2x128x128xf32, #tpu.memory_space<vmem>>, vector<1x1x128x128xf32>
      %19 = vector.shape_cast %18 : vector<1x1x128x128xf32> to vector<128x128xf32>
      %cst_13 = arith.constant dense<0.000000e+00> : vector<8x128xf32>
      %20 = tpu.matmul %14, %19, %cst_13 {dimension_numbers = #tpu.dot_dimension_numbers<[1], [1], [0], [0], [0, 0, 1, 0], [], []>} : vector<8x128xf32>, vector<128x128xf32>, vector<8x128xf32> -> vector<8x128xf32>
      %21 = arith.negf %17 : vector<8x128xf32>
      %22 = math.exp %21 : vector<8x128xf32>
      %cst_14 = arith.constant 1.000000e+00 : f32
      %23 = vector.broadcast %cst_14 : f32 to vector<8x128xf32>
      %24 = arith.addf %23, %22 : vector<8x128xf32>
      %25 = arith.divf %23, %24 : vector<8x128xf32>
      %26 = arith.mulf %17, %25 : vector<8x128xf32>
      %27 = arith.mulf %26, %20 : vector<8x128xf32>
      %c0_15 = arith.constant 0 : index
      %c0_16 = arith.constant 0 : index
      %c0_17 = arith.constant 0 : index
      %28 = vector.load %arg7[%c0_15, %c0_16, %c0_17] : memref<1x128x128xf32, #tpu.memory_space<vmem>>, vector<1x128x128xf32>
      %29 = vector.shape_cast %28 : vector<1x128x128xf32> to vector<128x128xf32>
      %cst_18 = arith.constant dense<0.000000e+00> : vector<8x128xf32>
      %30 = tpu.matmul %27, %29, %cst_18 {dimension_numbers = #tpu.dot_dimension_numbers<[1], [1], [0], [0], [0, 0, 1, 0], [], []>} : vector<8x128xf32>, vector<128x128xf32>, vector<8x128xf32> -> vector<8x128xf32>
      %c0_19 = arith.constant 0 : index
      %c0_20 = arith.constant 0 : index
      %31 = vector.load %arg10[%c0_19, %c0_20] : memref<8x128xf32, #tpu.memory_space<vmem>>, vector<8x128xf32>
      %c0_21 = arith.constant 0 : index
      %c0_22 = arith.constant 0 : index
      %c0_23 = arith.constant 0 : index
      %32 = vector.load %arg8[%c0_21, %c0_22, %c0_23] : memref<1x8x1xf32, #tpu.memory_space<vmem>>, vector<1x8x1xf32>
      %33 = vector.shape_cast %32 : vector<1x8x1xf32> to vector<8x1xf32>
      %34 = vector.broadcast %33 : vector<8x1xf32> to vector<8x128xf32>
      %35 = arith.mulf %34, %30 : vector<8x128xf32>
      %36 = arith.addf %31, %35 : vector<8x128xf32>
      %c0_24 = arith.constant 0 : index
      %c0_25 = arith.constant 0 : index
      %37 = vector.load %arg10[%c0_24, %c0_25] : memref<8x128xf32, #tpu.memory_space<vmem>>, vector<8x128xf32>
      tpu.vector_store %arg10[%c0_24, %c0_25], %36 {strides = array<i32>} : memref<8x128xf32, #tpu.memory_space<vmem>>, vector<8x128xf32>,
    } else {
    }
    %c7_i32 = arith.constant 7 : i32
    %9 = arith.cmpi eq, %arg1, %c7_i32 : i32
    %c1_i32 = arith.constant 1 : i32
    %10 = arith.cmpi eq, %arg2, %c1_i32 : i32
    %11 = arith.andi %9, %10 : i1
    %12 = arith.extui %11 : i1 to i32
    %c0_i32_3 = arith.constant 0 : i32
    %13 = arith.cmpi ne, %12, %c0_i32_3 : i32
    scf.if %13 {
      %c0_4 = arith.constant 0 : index
      %c0_5 = arith.constant 0 : index
      %14 = vector.load %arg10[%c0_4, %c0_5] : memref<8x128xf32, #tpu.memory_space<vmem>>, vector<8x128xf32>
      %c0_6 = arith.constant 0 : index
      %c0_7 = arith.constant 0 : index
      %15 = vector.load %arg9[%c0_6, %c0_7] : memref<8x128xf32, #tpu.memory_space<vmem>>, vector<8x128xf32>
      tpu.vector_store %arg9[%c0_6, %c0_7], %14 {strides = array<i32>} : memref<8x128xf32, #tpu.memory_space<vmem>>, vector<8x128xf32>,
    } else {
    }
    return
  }
  func.func @transform_0(%arg0: i32, %arg1: i32, %arg2: i32, %arg3: memref<8xi32, #tpu.memory_space<smem>>, %arg4: memref<1xi32, #tpu.memory_space<smem>>) -> (i32, i32) {
    %c0_i32 = arith.constant 0 : i32
    %c0_i32_0 = arith.constant 0 : i32
    return %arg0, %c0_i32 : i32, i32
  }
  func.func @transform_1(%arg0: i32, %arg1: i32, %arg2: i32, %arg3: memref<8xi32, #tpu.memory_space<smem>>, %arg4: memref<1xi32, #tpu.memory_space<smem>>) -> (i32, i32, i32, i32) {
    %0 = arith.index_cast %arg1 : i32 to index
    %1 = memref.load %arg3[%0] : memref<8xi32, #tpu.memory_space<smem>>
    %c0_i32 = arith.constant 0 : i32
    %c0_i32_0 = arith.constant 0 : i32
    %c0_i32_1 = arith.constant 0 : i32
    return %1, %c0_i32, %arg2, %c0_i32_0 : i32, i32, i32, i32
  }
  func.func @transform_2(%arg0: i32, %arg1: i32, %arg2: i32, %arg3: memref<8xi32, #tpu.memory_space<smem>>, %arg4: memref<1xi32, #tpu.memory_space<smem>>) -> (i32, i32, i32) {
    %0 = arith.index_cast %arg1 : i32 to index
    %1 = memref.load %arg3[%0] : memref<8xi32, #tpu.memory_space<smem>>
    %c0_i32 = arith.constant 0 : i32
    %c0_i32_0 = arith.constant 0 : i32
    return %1, %c0_i32, %arg2 : i32, i32, i32
  }
  func.func @transform_3(%arg0: i32, %arg1: i32, %arg2: i32, %arg3: memref<8xi32, #tpu.memory_space<smem>>, %arg4: memref<1xi32, #tpu.memory_space<smem>>) -> (i32, i32, i32) {
    %0 = arith.index_cast %arg1 : i32 to index
    %1 = memref.load %arg3[%0] : memref<8xi32, #tpu.memory_space<smem>>
    %c0_i32 = arith.constant 0 : i32
    %c0_i32_0 = arith.constant 0 : i32
    return %1, %arg0, %c0_i32 : i32, i32, i32
  }
  func.func @transform_4(%arg0: i32, %arg1: i32, %arg2: i32, %arg3: memref<8xi32, #tpu.memory_space<smem>>, %arg4: memref<1xi32, #tpu.memory_space<smem>>) -> (i32, i32) {
    %c0_i32 = arith.constant 0 : i32
    %c0_i32_0 = arith.constant 0 : i32
    return %arg0, %c0_i32 : i32, i32
  }
}

</mosaic_0001>

<llo_original>
// kernel: fused_moe_pallas.1
$region0: #{fused_moe_pallas.1}
  #allocation0 [shape = 'u32[]', space=smem, size = 0x4, offset = 0x4, fixed_abs, tag = 'smem constant byte address 0x4 - core index']
  #allocation1 [shape = 'u32[72,128]{1,0:T(1,128)}', space=vmem, size = 0x9000, scoped, tag = 'internal scratch']
  #allocation2 [shape = 'f32[8,128]{1,0:T(8,128)}', space=vmem, size = 0x1000, scoped, tag = 'scratch operand']
  #allocation3 [shape = 's32[1]{0}', space=sflag, size = 0x4, scoped, tag = 'scoped memory for fused_moe_pallas.1']
  #allocation4 [shape = 'u8[512]{0}', space=smem, size = 0x200, scoped, tag = 'prefetched SMEM operand 0']
  #allocation5 [shape = 's32[1]{0:T(128)S(6)}', space=smem, size = 0x200, scoped, tag = 'prefetched SMEM operand 1']
  #allocation13 [shape = 's32[]', space=sflag, size = 0x4, offset = 0, fixed_abs, tag = 'sflag constant byte address 0x0 - dummy sync flag']
  %s0 = inlined_call_operand.vmem [shape: s32[8], index: 0, kind: input, shape index: {}]
  %s1 = inlined_call_operand.<no memory space> [shape: s32[1], index: 1, kind: input, shape index: {}]
  %s2 = inlined_call_operand.hbm [shape: f32[16,128], index: 2, kind: input, shape index: {}]
  %s3 = inlined_call_operand.hbm [shape: f32[8,2,256,128], index: 3, kind: input, shape index: {}]
  %s4 = inlined_call_operand.hbm [shape: f32[8,128,256], index: 4, kind: input, shape index: {}]
  %s5 = inlined_call_operand.vmem [shape: f32[8,16,1], index: 5, kind: input, shape index: {}]
  %s6 = inlined_call_operand.hbm [shape: f32[16,128], index: 6, kind: output, shape index: {}]
  %s7 = sld [smem:[#allocation0]]
  $region73: #{fused_moe_pallas.1} parent=0
    _
  %s9 = ssub.s32 1, %s7
  %s10 = scalar_select 0, %s9, %s7
  %s12 = sshll.u32 %s0, 4
  %s13 = int_to_ptr.vmem [resolvable:$true] %s12
  %15 = dma.vmem_to_smem %s13, 16, [#allocation4], [#allocation3]
  %16 = sst [smem:[#allocation5]] %s1
  %18 = dma.done [#allocation3], 16
  %19 = sfence
  $region1: #{fused_moe_pallas.1} parent=0
    #allocation6 [shape = 'u8[8192]{0}', space=vmem, size = 0x2000, scoped, tag = 'input window, operand 2']
    #allocation7 [shape = 's32[2]{0}', space=sflag, size = 0x8, scoped, tag = 'scoped memory for fused_moe_pallas.1']
    #allocation8 [shape = 's32[2]{0}', space=sflag, size = 0x8, scoped, tag = 'scoped memory for fused_moe_pallas.1']
    #allocation9 [shape = 'u8[262144]{0}', space=vmem, size = 0x40000, scoped, tag = 'input window, operand 3']
    #allocation10 [shape = 's32[2]{0}', space=sflag, size = 0x8, scoped, tag = 'scoped memory for fused_moe_pallas.1']
    #allocation11 [shape = 'u8[131072]{0}', space=vmem, size = 0x20000, scoped, tag = 'input window, operand 4']
    #allocation12 [shape = 'u8[8192]{0}', space=vmem, size = 0x2000, scoped, tag = 'output window, operand 0']
    %20 = vsyncpa [#allocation7], 0
    %s21 = scalar_lea.sflag [#allocation7], 1
    %22 = vsyncpa %s21, 0
    %23 = vsyncpa [#allocation10], 0
    %s24 = scalar_lea.sflag [#allocation10], 1
    %25 = vsyncpa %s24, 0
    %26 = vsyncpa [#allocation8], 0
    %s27 = scalar_lea.sflag [#allocation8], 1
    %28 = vsyncpa %s27, 0
    loop: start=0, step=1, limit=34
    $region2: #{fused_moe_pallas.1} parent=1 // loop_pre_header
      _
    $region3: #{fused_moe_pallas.1} parent=1 // loop_header
      %s30 = sphi 0, %s34
      %p31 = scmp.ge.s32.totalorder %s30, 34
      %s37 = sphi 0, %s56
      %s38 = sphi 0, %s52
      %s39 = sphi 0, %s48
      %s40 = sphi 0, %s37
      %s41 = sphi 0, %s38
      %s42 = sphi 0, %s39
      %s43 = sphi 0, %s40
      %s44 = sphi 0, %s41
      %s45 = sphi 0, %s42
      %s59 = sphi 0, %s61
      %s62 = sphi 0, %s59
      %s63 = sphi 0, %s62
      %s79 = sphi 0, %s63
      %s89 = sphi 0, %s91
      %s92 = sphi 0, %s89
      %s93 = sphi 0, %s92
      %s109 = sphi 0, %s93
      %s119 = sphi 0, %s121
      %s122 = sphi 0, %s119
      %s123 = sphi 0, %s122
      %s139 = sphi 0, %s123
      %s149 = sphi 0, %s151
      %s152 = sphi 0, %s149
      %s153 = sphi 0, %s152
      %s169 = sphi 0, %s153
      %s175 = sphi 0, %s177
      %s178 = sphi 0, %s175
      %s179 = sphi 0, %s178
      %s195 = sphi 0, %s179
    $region4: #{fused_moe_pallas.1} parent=1 // loop_header_branch
      %33 = sbr.rel (%p31) target = $region8
    $region5: #{fused_moe_pallas.1} parent=1 // loop_body
      %s35 = ssub.s32 %s30, 1
      %s36 = ssub.s32 %s30, 2
      %s46 = sadd.s32 1, %s39
      %p47 = scmp.ge.s32.totalorder %s46, 2
      %s48 = scalar_select %p47, 0, %s46
      %s49 = sadd.s32 1, %s38
      %s50 = scalar_select %p47, %s49, %s38
      %p51 = scmp.ge.s32.totalorder %s50, 8
      %s52 = scalar_select %p51, 0, %s50
      %s53 = sadd.s32 1, %s37
      %s54 = scalar_select %p51, %s53, %s37
      %p55 = scmp.ge.s32.totalorder %s54, 2
      %s56 = scalar_select %p55, 0, %s54
      %s57 = ssub.s32 %s37, %s56
      %p58 = scmp.eq.s32.totalorder %s57, 0
      %s60 = sadd.s32 %s59, 1
      %s61 = scalar_select %p58, %s59, %s60
      %p64 = pneg %p58
      %p65 = scmp.eq.s32.totalorder %s30, 31
      %p66 = por %p64, %p65
      %p67 = scmp.ne.s32.totalorder %s59, %s62
      %p68 = scmp.eq.s32.totalorder %s30, 0
      %p69 = por %p67, %p68
      %p70 = scmp.ne.s32.totalorder %s59, %s62
      %p71 = scmp.eq.s32.totalorder %s35, 31
      %p72 = por %p70, %p71
      %p73 = scmp.ne.s32.totalorder %s62, %s63
      %p74 = scmp.eq.s32.totalorder %s35, 0
      %p75 = por %p73, %p74
      %p76 = scmp.ne.s32.totalorder %s62, %s63
      %p77 = scmp.eq.s32.totalorder %s36, 31
      %p78 = por %p76, %p77
      %p80 = scmp.ne.s32.totalorder %s63, %s79
      %p81 = scmp.eq.s32.totalorder %s36, 0
      %p82 = por %p80, %p81
      %s83 = sld [smem:[#allocation4 + %s38]]
      %s84 = sld [smem:[#allocation4 + %s52]]
      %s85 = ssub.s32 %s83, %s84
      %s86 = ssub.s32 %s39, %s48
      %s87 = sor.u32 %s85, %s86
      %p88 = scmp.eq.s32.totalorder %s87, 0
      %s90 = sadd.s32 %s89, 1
      %s91 = scalar_select %p88, %s89, %s90
      %p94 = pneg %p88
      %p95 = scmp.eq.s32.totalorder %s30, 31
      %p96 = por %p94, %p95
      %p97 = scmp.ne.s32.totalorder %s89, %s92
      %p98 = scmp.eq.s32.totalorder %s30, 0
      %p99 = por %p97, %p98
      %p100 = scmp.ne.s32.totalorder %s89, %s92
      %p101 = scmp.eq.s32.totalorder %s35, 31
      %p102 = por %p100, %p101
      %p103 = scmp.ne.s32.totalorder %s92, %s93
      %p104 = scmp.eq.s32.totalorder %s35, 0
      %p105 = por %p103, %p104
      %p106 = scmp.ne.s32.totalorder %s92, %s93
      %p107 = scmp.eq.s32.totalorder %s36, 31
      %p108 = por %p106, %p107
      %p110 = scmp.ne.s32.totalorder %s93, %s109
      %p111 = scmp.eq.s32.totalorder %s36, 0
      %p112 = por %p110, %p111
      %s113 = sld [smem:[#allocation4 + %s38]]
      %s114 = sld [smem:[#allocation4 + %s52]]
      %s115 = ssub.s32 %s113, %s114
      %s116 = ssub.s32 %s39, %s48
      %s117 = sor.u32 %s115, %s116
      %p118 = scmp.eq.s32.totalorder %s117, 0
      %s120 = sadd.s32 %s119, 1
      %s121 = scalar_select %p118, %s119, %s120
      %p124 = pneg %p118
      %p125 = scmp.eq.s32.totalorder %s30, 31
      %p126 = por %p124, %p125
      %p127 = scmp.ne.s32.totalorder %s119, %s122
      %p128 = scmp.eq.s32.totalorder %s30, 0
      %p129 = por %p127, %p128
      %p130 = scmp.ne.s32.totalorder %s119, %s122
      %p131 = scmp.eq.s32.totalorder %s35, 31
      %p132 = por %p130, %p131
      %p133 = scmp.ne.s32.totalorder %s122, %s123
      %p134 = scmp.eq.s32.totalorder %s35, 0
      %p135 = por %p133, %p134
      %p136 = scmp.ne.s32.totalorder %s122, %s123
      %p137 = scmp.eq.s32.totalorder %s36, 31
      %p138 = por %p136, %p137
      %p140 = scmp.ne.s32.totalorder %s123, %s139
      %p141 = scmp.eq.s32.totalorder %s36, 0
      %p142 = por %p140, %p141
      %s143 = sld [smem:[#allocation4 + %s38]]
      %s144 = sld [smem:[#allocation4 + %s52]]
      %s145 = ssub.s32 %s143, %s144
      %s146 = ssub.s32 %s37, %s56
      %s147 = sor.u32 %s145, %s146
      %p148 = scmp.eq.s32.totalorder %s147, 0
      %s150 = sadd.s32 %s149, 1
      %s151 = scalar_select %p148, %s149, %s150
      %p154 = pneg %p148
      %p155 = scmp.eq.s32.totalorder %s30, 31
      %p156 = por %p154, %p155
      %p157 = scmp.ne.s32.totalorder %s149, %s152
      %p158 = scmp.eq.s32.totalorder %s30, 0
      %p159 = por %p157, %p158
      %p160 = scmp.ne.s32.totalorder %s149, %s152
      %p161 = scmp.eq.s32.totalorder %s35, 31
      %p162 = por %p160, %p161
      %p163 = scmp.ne.s32.totalorder %s152, %s153
      %p164 = scmp.eq.s32.totalorder %s35, 0
      %p165 = por %p163, %p164
      %p166 = scmp.ne.s32.totalorder %s152, %s153
      %p167 = scmp.eq.s32.totalorder %s36, 31
      %p168 = por %p166, %p167
      %p170 = scmp.ne.s32.totalorder %s153, %s169
      %p171 = scmp.eq.s32.totalorder %s36, 0
      %p172 = por %p170, %p171
      %s173 = ssub.s32 %s37, %s56
      %p174 = scmp.eq.s32.totalorder %s173, 0
      %s176 = sadd.s32 %s175, 1
      %s177 = scalar_select %p174, %s175, %s176
      %p180 = pneg %p174
      %p181 = scmp.eq.s32.totalorder %s30, 31
      %p182 = por %p180, %p181
      %p183 = scmp.ne.s32.totalorder %s175, %s178
      %p184 = scmp.eq.s32.totalorder %s30, 0
      %p185 = por %p183, %p184
      %p186 = scmp.ne.s32.totalorder %s175, %s178
      %p187 = scmp.eq.s32.totalorder %s35, 31
      %p188 = por %p186, %p187
      %p189 = scmp.ne.s32.totalorder %s178, %s179
      %p190 = scmp.eq.s32.totalorder %s35, 0
      %p191 = por %p189, %p190
      %p192 = scmp.ne.s32.totalorder %s178, %s179
      %p193 = scmp.eq.s32.totalorder %s36, 31
      %p194 = por %p192, %p193
      %p196 = scmp.ne.s32.totalorder %s179, %s195
      %p197 = scmp.eq.s32.totalorder %s36, 0
      %p198 = por %p196, %p197
      %p199 = scmp.le.s32.totalorder 1, %s30
      %p200 = scmp.lt.s32.totalorder %s30, 33
      %p201 = pnand %p199, %p200
      %p202 = pneg %p201
      // Predicated region
      $region9: #{fused_moe_pallas.1} parent=5 // pred_check
        _
      $region10: #{fused_moe_pallas.1} parent=5 // pred_check_branch
        %204 = sbr.rel (%p201) target = $region12
      $region11: #{fused_moe_pallas.1} parent=5 // pred_region
        %s205 = ssub.s32 %s30, 1
      $region12: #{fused_moe_pallas.1} parent=5 // pred_fallthru
        _
      %p206 = scmp.lt.s32.totalorder %s30, 32
      // Predicated region
      $region13: #{fused_moe_pallas.1} parent=5 // pred_check
        %p207 = pneg %p206
      $region14: #{fused_moe_pallas.1} parent=5 // pred_check_branch
        %209 = sbr.rel (%p207) target = $region16
      $region15: #{fused_moe_pallas.1} parent=5 // pred_region
        // Predicated region
        $region17: #{fused_moe_pallas.1} parent=15 // pred_check
          %p210 = pneg %p69
        $region18: #{fused_moe_pallas.1} parent=15 // pred_check_branch
          %212 = sbr.rel (%p210) target = $region20
        $region19: #{fused_moe_pallas.1} parent=15 // pred_region
          %s213 = sand.u32 %s59, 1
          %s214 = scalar_lea.sflag [#allocation7], %s213
          %s215 = sand.u32 %s59, 1
          %s216 = smul.addr %s215, 8
          %s217 = scalar_lea.vmem [#allocation6], %s216
          %219 = vsyncadd %s214, 0
          %s220 = smul.addr %s37, 8
          %s221 = scalar_lea.hbm %s2, %s220
          %s223 = sshll.u32 %s221, 4
          %s224 = int_to_ptr.hbm [resolvable:$true] %s223
          %s225 = sshll.u32 %s217, 4
          %s226 = int_to_ptr.vmem [resolvable:$true] %s225
          %228 = dma.hbm_to_vmem [thread:$0]  %s224, 128, %s226, %s214
        $region20: #{fused_moe_pallas.1} parent=15 // pred_fallthru
          _
        // Predicated region
        $region21: #{fused_moe_pallas.1} parent=15 // pred_check
          %p229 = pneg %p99
        $region22: #{fused_moe_pallas.1} parent=15 // pred_check_branch
          %231 = sbr.rel (%p229) target = $region24
        $region23: #{fused_moe_pallas.1} parent=15 // pred_region
          #allocation14 [shape = 'u32[6]{0}', space=smem, size = 0x18, scoped, tag = 'DMA stride descriptor']
          %s232 = sand.u32 %s30, 1
          %s233 = scalar_lea.sflag [#allocation10], %s232
          %s234 = sand.u32 %s89, 1
          %s235 = smul.addr %s234, 256
          %s236 = scalar_lea.vmem [#allocation9], %s235
          %s237 = sld [smem:[#allocation4 + %s38]]
          %s238 = smul.u32 16, %s39
          %240 = vsyncadd %s233, 0
          %s241 = smul.addr %s237, 64
          %s242 = sadd.s32 %s238, %s241
          %s243 = smul.addr %s242, 8
          %s244 = scalar_lea.hbm %s3, %s243
          %s246 = sshll.u32 1, 14
          %s247 = sxor.u32 4294967295, %s246
          %s249 = sld [smem:[#allocation0]]
          %s250 = sadd.s32 2, %s249
          %s252 = sshll.u32 7, 26
          %s253 = sxor.u32 4294967295, %s252
          %s254 = sand.u32 0, %s253
          %s255 = sshll.u32 %s250, 26
          %s256 = sor.u32 %s254, %s255
          %s257 = sshll.u32 %s244, 4
          %s258 = int_to_ptr.hbm [resolvable:$true] %s257
          %s259 = sshll.u32 %s236, 4
          %s260 = int_to_ptr.vmem [resolvable:$true] %s259
          %266 = sst [smem:[#allocation14]] 4096
          %s267 = scalar_lea.smem [#allocation14], 1
          %268 = sst [smem:[%s267]] 2048
          %s269 = scalar_lea.smem [#allocation14], 2
          %270 = sst [smem:[%s269]] 16
          %s271 = scalar_lea.smem [#allocation14], 3
          %272 = sst [smem:[%s271]] 128
          %s273 = scalar_lea.smem [#allocation14], 4
          %274 = sst [smem:[%s273]] 128
          %s275 = scalar_lea.smem [#allocation14], 5
          %276 = sst [smem:[%s275]] 8
          %278 = dma.general %s258, 4096, %s260, %s233, [#allocation13], [#allocation14], %s256, 0
        $region24: #{fused_moe_pallas.1} parent=15 // pred_fallthru
          _
        // Predicated region
        $region25: #{fused_moe_pallas.1} parent=15 // pred_check
          %p279 = pneg %p129
        $region26: #{fused_moe_pallas.1} parent=15 // pred_check_branch
          %281 = sbr.rel (%p279) target = $region28
        $region27: #{fused_moe_pallas.1} parent=15 // pred_region
          %s282 = sand.u32 %s30, 1
          %s283 = scalar_lea.sflag [#allocation10], %s282
          %s284 = sand.u32 %s119, 1
          %s285 = smul.addr %s284, 128
          %s286 = scalar_lea.vmem [#allocation11], %s285
          %s287 = sld [smem:[#allocation4 + %s38]]
          %289 = vsyncadd %s283, 0
          %s290 = smul.addr %s287, 32
          %s291 = sadd.s32 %s39, %s290
          %s292 = smul.addr %s291, 8
          %s293 = scalar_lea.hbm %s4, %s292
          %s294 = sshll.u32 %s293, 4
          %s295 = int_to_ptr.hbm [resolvable:$true] %s294
          %s296 = sshll.u32 %s286, 4
          %s297 = int_to_ptr.vmem [resolvable:$true] %s296
          %302 = dma.hbm_to_vmem [thread:$0]  %s295, 2048, %s297, %s283, 256, 128, 8
        $region28: #{fused_moe_pallas.1} parent=15 // pred_fallthru
          _
        // Predicated region
        $region29: #{fused_moe_pallas.1} parent=15 // pred_check
          %p303 = pneg %p159
        $region30: #{fused_moe_pallas.1} parent=15 // pred_check_branch
          %305 = sbr.rel (%p303) target = $region32
        $region31: #{fused_moe_pallas.1} parent=15 // pred_region
          %s306 = sld [smem:[#allocation4 + %s38]]
          %p307 = scmp.lt.s32.totalorder %s306, 7
          %s308 = scalar_select %p307, %s306, 7
          %p309 = scmp.lt.s32.totalorder %s37, 1
          %s310 = scalar_select %p309, %s37, 1
          %s311 = smul.addr %s308, 2
          %s312 = sadd.s32 %s310, %s311
          %s313 = smul.addr %s312, 8
          %s314 = scalar_lea.vmem %s5, %s313
          %s315 = sld [smem:[#allocation4 + %s38]]
        $region32: #{fused_moe_pallas.1} parent=15 // pred_fallthru
          _
      $region16: #{fused_moe_pallas.1} parent=5 // pred_fallthru
        _
      %p316 = scmp.le.s32.totalorder 1, %s30
      %p317 = scmp.lt.s32.totalorder %s30, 33
      %p318 = pnand %p316, %p317
      %p319 = pneg %p318
      // Predicated region
      $region33: #{fused_moe_pallas.1} parent=5 // pred_check
        _
      $region34: #{fused_moe_pallas.1} parent=5 // pred_check_branch
        %321 = sbr.rel (%p318) target = $region36
      $region35: #{fused_moe_pallas.1} parent=5 // pred_region
        %s322 = ssub.s32 %s30, 1
        %s323 = sand.u32 %s62, 1
        %s324 = scalar_lea.sflag [#allocation7], %s323
        %s325 = sand.u32 %s62, 1
        %s326 = smul.addr %s325, 8
        %s327 = scalar_lea.vmem [#allocation6], %s326
        // Predicated region
        $region37: #{fused_moe_pallas.1} parent=35 // pred_check
          %p328 = pneg %p75
        $region38: #{fused_moe_pallas.1} parent=35 // pred_check_branch
          %330 = sbr.rel (%p328) target = $region40
        $region39: #{fused_moe_pallas.1} parent=35 // pred_region
          %332 = dma.done %s324, 128
        $region40: #{fused_moe_pallas.1} parent=35 // pred_fallthru
          _
        %s333 = sand.u32 %s35, 1
        %s334 = scalar_lea.sflag [#allocation10], %s333
        %s335 = sand.u32 %s92, 1
        %s336 = smul.addr %s335, 256
        %s337 = scalar_lea.vmem [#allocation9], %s336
        // Predicated region
        $region41: #{fused_moe_pallas.1} parent=35 // pred_check
          %p338 = pneg %p105
        $region42: #{fused_moe_pallas.1} parent=35 // pred_check_branch
          %340 = sbr.rel (%p338) target = $region44
        $region43: #{fused_moe_pallas.1} parent=35 // pred_region
          %342 = dma.done %s334, 4096
        $region44: #{fused_moe_pallas.1} parent=35 // pred_fallthru
          _
        %s343 = sand.u32 %s35, 1
        %s344 = scalar_lea.sflag [#allocation10], %s343
        %s345 = sand.u32 %s122, 1
        %s346 = smul.addr %s345, 128
        %s347 = scalar_lea.vmem [#allocation11], %s346
        // Predicated region
        $region45: #{fused_moe_pallas.1} parent=35 // pred_check
          %p348 = pneg %p135
        $region46: #{fused_moe_pallas.1} parent=35 // pred_check_branch
          %350 = sbr.rel (%p348) target = $region48
        $region47: #{fused_moe_pallas.1} parent=35 // pred_region
          %352 = dma.done %s344, 2048
        $region48: #{fused_moe_pallas.1} parent=35 // pred_fallthru
          _
        %s353 = sand.u32 %s62, 1
        %s354 = scalar_lea.sflag [#allocation7], %s353
        %s355 = sand.u32 %s62, 1
        %s356 = smul.addr %s355, 8
        %s357 = scalar_lea.vmem [#allocation6], %s356
        %p358 = pneg %p75
        %p359 = pneg %p72
        %s360 = sand.u32 %s35, 1
        %s361 = scalar_lea.sflag [#allocation10], %s360
        %s362 = sand.u32 %s92, 1
        %s363 = smul.addr %s362, 256
        %s364 = scalar_lea.vmem [#allocation9], %s363
        %p365 = pneg %p105
        %p366 = pneg %p102
        %s367 = sand.u32 %s35, 1
        %s368 = scalar_lea.sflag [#allocation10], %s367
        %s369 = sand.u32 %s122, 1
        %s370 = smul.addr %s369, 128
        %s371 = scalar_lea.vmem [#allocation11], %s370
        %p372 = pneg %p135
        %p373 = pneg %p132
        %s374 = sld [smem:[#allocation4 + %s41]]
        %p375 = scmp.lt.s32.totalorder %s374, 7
        %s376 = scalar_select %p375, %s374, 7
        %p377 = scmp.lt.s32.totalorder %s40, 1
        %s378 = scalar_select %p377, %s40, 1
        %s379 = smul.addr %s376, 2
        %s380 = sadd.s32 %s378, %s379
        %s381 = smul.addr %s380, 8
        %s382 = scalar_lea.vmem %s5, %s381
        %p383 = pneg %p165
        %p384 = pneg %p162
        %p385 = pneg %p191
        %p386 = pneg %p188
        %s387 = sand.u32 %s178, 1
        %s388 = scalar_lea.sflag [#allocation8], %s387
        %s389 = sand.u32 %s178, 1
        %s390 = smul.addr %s389, 8
        %s391 = scalar_lea.vmem [#allocation12], %s390
        %s392 = sld [smem:[#allocation4 + %s41]]
        %s393 = smul.u32 16, %s42
        %s394 = sld [smem:[#allocation4 + %s41]]
        %s395 = sld [smem:[#allocation4 + %s41]]
        %p396 = scmp.lt.s32.totalorder %s395, 7
        %s397 = scalar_select %p396, %s395, 7
        %p398 = scmp.lt.s32.totalorder %s40, 1
        %s399 = scalar_select %p398, %s40, 1
        %s400 = smul.addr %s397, 2
        %s401 = sadd.s32 %s399, %s400
        %s402 = smul.addr %s401, 8
        %s403 = scalar_lea.vmem %s5, %s402
        %s404 = sld [smem:[#allocation4 + %s41]]
        %p405 = scmp.eq.s32.totalorder %s41, 0
        %p406 = scmp.eq.s32.totalorder %s42, 0
        %p407 = pnand %p405, %p406
        %p408 = pneg %p407
        // Predicated region
        $region49: #{fused_moe_pallas.1} parent=35 // pred_check
          _
        $region50: #{fused_moe_pallas.1} parent=35 // pred_check_branch
          %410 = sbr.rel (%p407) target = $region52
        $region51: #{fused_moe_pallas.1} parent=35 // pred_region
          %411 = vst [vmem:[#allocation2] sm:$0xff] 0.0
        $region52: #{fused_moe_pallas.1} parent=35 // pred_fallthru
          _
        %s412 = sld [smem:[#allocation5]]
        %p413 = scmp.lt.s32.totalorder %s41, %s412
        // Predicated region
        $region53: #{fused_moe_pallas.1} parent=35 // pred_check
          %p414 = pneg %p413
        $region54: #{fused_moe_pallas.1} parent=35 // pred_check_branch
          %416 = sbr.rel (%p414) target = $region56
        $region55: #{fused_moe_pallas.1} parent=35 // pred_region
          %v417 = vld [vmem:[%s327] sm:$0xff]
          %v418 = vld [vmem:[%s337] sm:$0xff]
          %v419 = vld [vmem:[%s337 + $0x8] sm:$0xff]
          %v420 = vld [vmem:[%s337 + $0x10] sm:$0xff]
          %v421 = vld [vmem:[%s337 + $0x18] sm:$0xff]
          %v422 = vld [vmem:[%s337 + $0x20] sm:$0xff]
          %v423 = vld [vmem:[%s337 + $0x28] sm:$0xff]
          %v424 = vld [vmem:[%s337 + $0x30] sm:$0xff]
          %v425 = vld [vmem:[%s337 + $0x38] sm:$0xff]
          %v426 = vld [vmem:[%s337 + $0x40] sm:$0xff]
          %v427 = vld [vmem:[%s337 + $0x48] sm:$0xff]
          %v428 = vld [vmem:[%s337 + $0x50] sm:$0xff]
          %v429 = vld [vmem:[%s337 + $0x58] sm:$0xff]
          %v430 = vld [vmem:[%s337 + $0x60] sm:$0xff]
          %v431 = vld [vmem:[%s337 + $0x68] sm:$0xff]
          %v432 = vld [vmem:[%s337 + $0x70] sm:$0xff]
          %v433 = vld [vmem:[%s337 + $0x78] sm:$0xff]
          %434 = vmatpush.xpose.msra.mxu0 %v433
          %435 = vmatpush.xpose.msra.mxu0 %v432
          %436 = vmatpush.xpose.msra.mxu0 %v431
          %437 = vmatpush.xpose.msra.mxu0 %v430
          %438 = vmatpush.xpose.msra.mxu0 %v429
          %439 = vmatpush.xpose.msra.mxu0 %v428
          %440 = vmatpush.xpose.msra.mxu0 %v427
          %441 = vmatpush.xpose.msra.mxu0 %v426
          %442 = vmatpush.xpose.msra.mxu0 %v425
          %443 = vmatpush.xpose.msra.mxu0 %v424
          %444 = vmatpush.xpose.msra.mxu0 %v423
          %445 = vmatpush.xpose.msra.mxu0 %v422
          %446 = vmatpush.xpose.msra.mxu0 %v421
          %447 = vmatpush.xpose.msra.mxu0 %v420
          %448 = vmatpush.xpose.msra.mxu0 %v419
          %449 = vmatpush.xpose.msra.mxu0 %v418
          %450 = vmatmul.f32.gmra.mxu0 %v417
          %v451 = vpop.f32.mrf.mxu0
          %v452 = vadd.f32 0.0, %v451
          %453 = vdwg.mxu0
          %s454 = scalar_lea.vmem %s337, 128 [#allocation9]
          %v455 = vld [vmem:[%s454] sm:$0xff]
          %v456 = vld [vmem:[%s454 + $0x8] sm:$0xff]
          %v457 = vld [vmem:[%s454 + $0x10] sm:$0xff]
          %v458 = vld [vmem:[%s454 + $0x18] sm:$0xff]
          %v459 = vld [vmem:[%s454 + $0x20] sm:$0xff]
          %v460 = vld [vmem:[%s454 + $0x28] sm:$0xff]
          %v461 = vld [vmem:[%s454 + $0x30] sm:$0xff]
          %v462 = vld [vmem:[%s454 + $0x38] sm:$0xff]
          %v463 = vld [vmem:[%s454 + $0x40] sm:$0xff]
          %v464 = vld [vmem:[%s454 + $0x48] sm:$0xff]
          %v465 = vld [vmem:[%s454 + $0x50] sm:$0xff]
          %v466 = vld [vmem:[%s454 + $0x58] sm:$0xff]
          %v467 = vld [vmem:[%s454 + $0x60] sm:$0xff]
          %v468 = vld [vmem:[%s454 + $0x68] sm:$0xff]
          %v469 = vld [vmem:[%s454 + $0x70] sm:$0xff]
          %v470 = vld [vmem:[%s454 + $0x78] sm:$0xff]
          %471 = vmatpush.xpose.msra.mxu0 %v470
          %472 = vmatpush.xpose.msra.mxu0 %v469
          %473 = vmatpush.xpose.msra.mxu0 %v468
          %474 = vmatpush.xpose.msra.mxu0 %v467
          %475 = vmatpush.xpose.msra.mxu0 %v466
          %476 = vmatpush.xpose.msra.mxu0 %v465
          %477 = vmatpush.xpose.msra.mxu0 %v464
          %478 = vmatpush.xpose.msra.mxu0 %v463
          %479 = vmatpush.xpose.msra.mxu0 %v462
          %480 = vmatpush.xpose.msra.mxu0 %v461
          %481 = vmatpush.xpose.msra.mxu0 %v460
          %482 = vmatpush.xpose.msra.mxu0 %v459
          %483 = vmatpush.xpose.msra.mxu0 %v458
          %484 = vmatpush.xpose.msra.mxu0 %v457
          %485 = vmatpush.xpose.msra.mxu0 %v456
          %486 = vmatpush.xpose.msra.mxu0 %v455
          %487 = vmatmul.f32.gmra.mxu0 %v417
          %v488 = vpop.f32.mrf.mxu0
          %v489 = vadd.f32 0.0, %v488
          %490 = vdwg.mxu0
          %v491 = vxor.u32 %v452, 2147483648
          %v492 = vmul.f32 %v491, 1.442695
          %v493 = vpow.pop %v492
          %v494 = vadd.f32 %v493, 1.0
          %v495 = vrcp.pop %v494
          %v496 = vmul.f32 %v494, %v495
          %v497 = vsub.f32 1.0, %v496
          %v498 = vmul.f32 %v495, %v497
          %v499 = vadd.f32 %v495, %v498
          %vm500 = vweird.f32 %v494
          %vm501 = vweird.f32 %v495
          %vm502 = vmor %vm500, %vm501
          %v503 = vsel %vm502, %v495, %v499
          %v504 = vand.u32 2147483647, %v494
          %vm505 = vcmp.eq.f32.partialorder %v504, 8.507059e+37
          %v506 = vand.u32 %v494, 2147483648
          %v507 = vor.u32 1.1754944e-38, %v506
          %v508 = vsel %vm505, %v507, %v503
          %v509 = vmul.f32 1.0, %v508
          %v510 = vmul.f32 %v452, %v509
          %v511 = vmul.f32 %v510, %v489
          %v512 = vld [vmem:[%s347] sm:$0xff]
          %v513 = vld [vmem:[%s347 + $0x8] sm:$0xff]
          %v514 = vld [vmem:[%s347 + $0x10] sm:$0xff]
          %v515 = vld [vmem:[%s347 + $0x18] sm:$0xff]
          %v516 = vld [vmem:[%s347 + $0x20] sm:$0xff]
          %v517 = vld [vmem:[%s347 + $0x28] sm:$0xff]
          %v518 = vld [vmem:[%s347 + $0x30] sm:$0xff]
          %v519 = vld [vmem:[%s347 + $0x38] sm:$0xff]
          %v520 = vld [vmem:[%s347 + $0x40] sm:$0xff]
          %v521 = vld [vmem:[%s347 + $0x48] sm:$0xff]
          %v522 = vld [vmem:[%s347 + $0x50] sm:$0xff]
          %v523 = vld [vmem:[%s347 + $0x58] sm:$0xff]
          %v524 = vld [vmem:[%s347 + $0x60] sm:$0xff]
          %v525 = vld [vmem:[%s347 + $0x68] sm:$0xff]
          %v526 = vld [vmem:[%s347 + $0x70] sm:$0xff]
          %v527 = vld [vmem:[%s347 + $0x78] sm:$0xff]
          %528 = vmatpush.xpose.msra.mxu0 %v527
          %529 = vmatpush.xpose.msra.mxu0 %v526
          %530 = vmatpush.xpose.msra.mxu0 %v525
          %531 = vmatpush.xpose.msra.mxu0 %v524
          %532 = vmatpush.xpose.msra.mxu0 %v523
          %533 = vmatpush.xpose.msra.mxu0 %v522
          %534 = vmatpush.xpose.msra.mxu0 %v521
          %535 = vmatpush.xpose.msra.mxu0 %v520
          %536 = vmatpush.xpose.msra.mxu0 %v519
          %537 = vmatpush.xpose.msra.mxu0 %v518
          %538 = vmatpush.xpose.msra.mxu0 %v517
          %539 = vmatpush.xpose.msra.mxu0 %v516
          %540 = vmatpush.xpose.msra.mxu0 %v515
          %541 = vmatpush.xpose.msra.mxu0 %v514
          %542 = vmatpush.xpose.msra.mxu0 %v513
          %543 = vmatpush.xpose.msra.mxu0 %v512
          %544 = vmatmul.f32.gmra.mxu0 %v511
          %v545 = vpop.f32.mrf.mxu0
          %v546 = vadd.f32 0.0, %v545
          %547 = vdwg.mxu0
          %v548 = vld [vmem:[#allocation2] sm:$0xff]
          %v549 = vld [vmem:[%s403] sm:$0xff]
          %551 = vset.pattern.permute.xlu0 0
          %552 = vperm.xlu0 %551, %v549
          %v553 = vpop.permute.xlu0 %552
          %v555 = vmul.f32 %v553, %v546
          %v556 = vadd.f32 %v548, %v555
          %557 = vst [vmem:[#allocation2] sm:$0xff] %v556
        $region56: #{fused_moe_pallas.1} parent=35 // pred_fallthru
          _
        %p558 = scmp.eq.s32.totalorder %s41, 7
        %p559 = scmp.eq.s32.totalorder %s42, 1
        %p560 = pnand %p558, %p559
        %p561 = pneg %p560
        // Predicated region
        $region57: #{fused_moe_pallas.1} parent=35 // pred_check
          _
        $region58: #{fused_moe_pallas.1} parent=35 // pred_check_branch
          %563 = sbr.rel (%p560) target = $region60
        $region59: #{fused_moe_pallas.1} parent=35 // pred_region
          %v564 = vld [vmem:[#allocation2] sm:$0xff]
          %565 = vst [vmem:[%s391] sm:$0xff] %v564
        $region60: #{fused_moe_pallas.1} parent=35 // pred_fallthru
          _
        %s566 = sand.u32 %s178, 1
        %s567 = scalar_lea.sflag [#allocation8], %s566
        %s568 = sand.u32 %s178, 1
        %s569 = smul.addr %s568, 8
        %s570 = scalar_lea.vmem [#allocation12], %s569
        // Predicated region
        $region61: #{fused_moe_pallas.1} parent=35 // pred_check
          %p571 = pneg %p188
        $region62: #{fused_moe_pallas.1} parent=35 // pred_check_branch
          %573 = sbr.rel (%p571) target = $region64
        $region63: #{fused_moe_pallas.1} parent=35 // pred_region
          %575 = vsyncadd %s567, 0
          %s576 = smul.addr %s40, 8
          %s577 = scalar_lea.hbm %s6, %s576
          %s579 = sshll.u32 %s570, 4
          %s580 = int_to_ptr.vmem [resolvable:$true] %s579
          %s581 = sshll.u32 %s577, 4
          %s582 = int_to_ptr.hbm [resolvable:$true] %s581
          %584 = dma.vmem_to_hbm [thread:$0]  %s580, 128, %s582, %s567
        $region64: #{fused_moe_pallas.1} parent=35 // pred_fallthru
          _
      $region36: #{fused_moe_pallas.1} parent=5 // pred_fallthru
        _
      %p585 = scmp.le.s32.totalorder 2, %s30
      // Predicated region
      $region65: #{fused_moe_pallas.1} parent=5 // pred_check
        %p586 = pneg %p585
      $region66: #{fused_moe_pallas.1} parent=5 // pred_check_branch
        %588 = sbr.rel (%p586) target = $region68
      $region67: #{fused_moe_pallas.1} parent=5 // pred_region
        %s589 = ssub.s32 %s30, 2
        // Predicated region
        $region69: #{fused_moe_pallas.1} parent=67 // pred_check
          %p590 = pneg %p194
        $region70: #{fused_moe_pallas.1} parent=67 // pred_check_branch
          %592 = sbr.rel (%p590) target = $region72
        $region71: #{fused_moe_pallas.1} parent=67 // pred_region
          %s593 = sand.u32 %s179, 1
          %s594 = scalar_lea.sflag [#allocation8], %s593
          %s595 = sand.u32 %s179, 1
          %s596 = smul.addr %s595, 8
          %s597 = scalar_lea.vmem [#allocation12], %s596
          %599 = dma.done %s594, 128
        $region72: #{fused_moe_pallas.1} parent=67 // pred_fallthru
          _
      $region68: #{fused_moe_pallas.1} parent=5 // pred_fallthru
        _
    $region6: #{fused_moe_pallas.1} parent=1 // loop_footer
      %s34 = sadd.s32 1, %s30
    $region7: #{fused_moe_pallas.1} parent=1 // loop_footer_branch
      %29 = sbr.rel target = $region3
    $region8: #{fused_moe_pallas.1} parent=1 // loop_exit
      _
    %600 = vsyncpa [#allocation7], 1
    %s601 = scalar_lea.sflag [#allocation7], 1
    %602 = vsyncpa %s601, 1
    %603 = vsyncpa [#allocation10], 1
    %s604 = scalar_lea.sflag [#allocation10], 1
    %605 = vsyncpa %s604, 1
    %606 = vsyncpa [#allocation8], 1
    %s607 = scalar_lea.sflag [#allocation8], 1
    %608 = vsyncpa %s607, 1

</llo_original>
